<compile_context>
chip_gen: v6e
topology: v6e:2x2x1
jax: 0.10.0
libtpu: 0.0.40
codegen_flags: <defaults>
</compile_context>

<pallas_src>
import jax
import jax.numpy as jnp
from jax.experimental import pallas as pl
from jax.experimental.pallas import tpu as pltpu

LANE = 128


def _pad_axis(x, axis, mult):
    """Zero-pad `axis` of x up to the next multiple of `mult`."""
    size = x.shape[axis]
    pad = (-size) % mult
    if pad == 0:
        return x
    widths = [(0, 0)] * x.ndim
    widths[axis] = (0, pad)
    return jnp.pad(x, widths)


def vqa_kernel(v_ref, bow_ref, wt_ref, bt_ref,
               w1v_ref, w1q_ref, b1_ref, w2_ref, b2_ref, out_ref):
    # ---- visual branch: L2-normalize over channels (lane axis), global avg pool ----
    v = v_ref[...]                                              # (tn, S, C) f32, channels on lanes
    sumsq = jnp.sum(v * v, axis=-1, keepdims=True)              # (tn, S, 1)
    # One reciprocal per spatial position (small tensor), broadcast-multiply the big one.
    inv = pl.reciprocal(jnp.sqrt(sumsq) + 1e-8, approx=False)   # (tn, S, 1)
    v_feat = jnp.mean(v * inv, axis=1)                          # (tn, C)  adaptive avg pool (1,1)

    mm_dtype = wt_ref.dtype                                     # f32, or bf16 on v6e/v7x

    # ---- text branch: pre-pooled embeddings -> Linear -> tanh (f32 accumulation) ----
    q_feat = jnp.tanh(
        jnp.dot(bow_ref[...], wt_ref[...], preferred_element_type=jnp.float32)
        + bt_ref[...]
    )                                                           # (tn, Q) f32

    # ---- fusion (concat) + classifier MLP; concat expressed as split matmuls ----
    h = (jnp.dot(v_feat.astype(mm_dtype), w1v_ref[...], preferred_element_type=jnp.float32)
         + jnp.dot(q_feat.astype(mm_dtype), w1q_ref[...], preferred_element_type=jnp.float32)
         + b1_ref[...])                                         # (tn, HID)
    h = jnp.maximum(h, 0.0)                                     # ReLU (f32)
    logits = (jnp.dot(h.astype(mm_dtype), w2_ref[...], preferred_element_type=jnp.float32)
              + b2_ref[...])                                    # (tn, Ap) -- lane-dense store
    out_ref[...] = logits.astype(out_ref.dtype)


def vqa_forward(v_nchw, q_tokens, params, *, matmul_dtype=jnp.float32, batch_tile=None):
    """v_nchw: (N, C, H, W) float32, q_tokens: (N, T) int32.

    matmul_dtype: jnp.float32 (default, all chips) or jnp.bfloat16 (v6e/v7x MXU).
    batch_tile:   rows per grid step (defaults to N; for large N pick a multiple
                  of 8 to shard the batch across grid steps / v7x TensorCores).
    """
    N, C, H, W = v_nchw.shape
    S = H * W

    # ---- layout plumbing (wrapper-side, fused by XLA) ----
    # Visual: NCHW -> (N, S, C) channel-last; C stays at its natural size
    # (contraction dim -> no padding, 1x HBM traffic, one contiguous DMA/block).
    v = v_nchw.reshape(N, C, S).transpose(0, 2, 1)              # (N, S, C)

    # Text: embedding gather + sum pool outside the kernel (cuts DMA by T x).
    bow = jnp.take(params["emb_table"], q_tokens, axis=0).sum(axis=1)   # (N, E)
    E = bow.shape[1]

    # Weights/biases at natural sizes except the OUTPUT (answer) dim, which is
    # zero-padded to a lane-dense width so the final store is unmasked.
    wt = params["wt"]                                            # (E, Q)
    bt = params["bt"].reshape(1, -1)                             # (1, Q)
    w1v = params["w1v"]                                          # (C, HID)
    w1q = params["w1q"]                                          # (Q, HID)
    b1 = params["b1"].reshape(1, -1)                             # (1, HID)
    w2 = _pad_axis(params["w2"], 1, LANE)                        # (HID, Ap)
    b2 = _pad_axis(params["b2"].reshape(1, -1), 1, LANE)         # (1, Ap)
    Q, HID, A = wt.shape[1], w1v.shape[1], params["w2"].shape[1]
    Ap = w2.shape[1]

    # Optional bf16 matmul operands (keep biases + element-wise math in f32).
    if matmul_dtype != jnp.float32:
        bow = bow.astype(matmul_dtype)
        wt, w1v, w1q, w2 = (x.astype(matmul_dtype) for x in (wt, w1v, w1q, w2))

    tn = N if batch_tile is None else batch_tile
    assert N % tn == 0, "batch_tile must divide N"
    grid = (N // tn,)

    const2 = lambda i: (0, 0)  # resident weights: never re-fetched across steps

    itemsize = lambda x: x.size * jnp.dtype(x.dtype).itemsize
    cost = pl.CostEstimate(
        flops=int(2 * N * (E * Q + C * HID + Q * HID + HID * Ap) + 3 * N * S * C),
        transcendentals=int(N * Q + N * S),                      # tanh + sqrt/recip
        bytes_accessed=int(sum(itemsize(x) for x in
                               (v, bow, wt, bt, w1v, w1q, b1, w2, b2)) + N * Ap * 4),
    )

    out = pl.pallas_call(
        vqa_kernel,
        out_shape=jax.ShapeDtypeStruct((N, Ap), jnp.float32),    # lane-dense output
        grid_spec=pltpu.PrefetchScalarGridSpec(
            num_scalar_prefetch=0,
            grid=grid,
            in_specs=[
                pl.BlockSpec((tn, S, C), lambda i: (i, 0, 0)),   # visual features
                pl.BlockSpec((tn, E), lambda i: (i, 0)),         # pooled embeddings
                pl.BlockSpec(wt.shape, const2),
                pl.BlockSpec(bt.shape, const2),
                pl.BlockSpec(w1v.shape, const2),
                pl.BlockSpec(w1q.shape, const2),
                pl.BlockSpec(b1.shape, const2),
                pl.BlockSpec(w2.shape, const2),
                pl.BlockSpec(b2.shape, const2),
            ],
            out_specs=pl.BlockSpec((tn, Ap), lambda i: (i, 0)),
        ),
        compiler_params=pltpu.CompilerParams(
            dimension_semantics=("parallel",),                   # batch shards across TCs (v7x)
            vmem_limit_bytes=32 << 20,                           # fits v7x's 64 MiB VMEM too
        ),
        cost_estimate=cost,
    )(v, bow, wt, bt, w1v, w1q, b1, w2, b2)

    return out[:, :A]                                            # drop zero-padded answer columns


def reference_forward(v_nchw, q_tokens, params):
    """Pure-JAX reference mirroring the PyTorch forward (for a sanity check)."""
    v = v_nchw
    norm = jnp.sqrt(jnp.sum(v * v, axis=1, keepdims=True))
    v = v / (norm + 1e-8)
    v_feat = jnp.mean(v, axis=(2, 3))                            # (N, C)
    emb = jnp.take(params["emb_table"], q_tokens, axis=0)
    q_feat = jnp.tanh(jnp.sum(emb, axis=1) @ params["wt"] + params["bt"])
    fused = jnp.concatenate([v_feat, q_feat], axis=-1)
    w1 = jnp.concatenate([params["w1v"], params["w1q"]], axis=0)
    h = jnp.maximum(fused @ w1 + params["b1"], 0.0)
    return h @ params["w2"] + params["b2"]


if __name__ == "__main__":
    # Small shapes consistent with the module's forward.
    N = 2            # batch
    C = 32           # visual_feature_size (channels)
    Hh = Ww = 8      # spatial
    T = 8            # question length
    V = 50           # vocab size
    E = 32           # word embedding dim
    Q = 32           # question_feature_size
    HID = 64         # classifier hidden size
    A = 16           # number of answers

    key = jax.random.PRNGKey(0)
    ks = jax.random.split(key, 10)

    # Deterministic synthetic parameters (Linear weights stored as (in, out)).
    params = {
        "emb_table": 0.1 * jax.random.normal(ks[0], (V, E), jnp.float32),
        "wt":  0.05 * jax.random.normal(ks[1], (E, Q), jnp.float32),
        "bt":  0.01 * jax.random.normal(ks[2], (Q,), jnp.float32),
        "w1v": 0.05 * jax.random.normal(ks[3], (C, HID), jnp.float32),
        "w1q": 0.05 * jax.random.normal(ks[4], (Q, HID), jnp.float32),
        "b1":  0.01 * jax.random.normal(ks[5], (HID,), jnp.float32),
        "w2":  0.05 * jax.random.normal(ks[6], (HID, A), jnp.float32),
        "b2":  0.01 * jax.random.normal(ks[7], (A,), jnp.float32),
    }

    # Inputs: pre-extracted visual feature map (NCHW) and tokenized question.
    v_in = jax.random.normal(ks[8], (N, C, Hh, Ww), jnp.float32)
    q_in = jax.random.randint(ks[9], (N, T), 0, V, dtype=jnp.int32)

    ref = reference_forward(v_in, q_in, params)

    # f32 matmul path (all chips) — strict check against the PyTorch-equivalent reference.
    out = vqa_forward(v_in, q_in, params)
    out = jax.block_until_ready(out)
    assert out.shape == (N, A)
    assert jnp.allclose(out, ref, atol=1e-4, rtol=1e-4), "mismatch vs reference (f32)"

    # bf16 MXU-operand path (recommended on v6e/v7x) — looser tolerance for bf16 operands.
    out_bf16 = vqa_forward(v_in, q_in, params, matmul_dtype=jnp.bfloat16)
    out_bf16 = jax.block_until_ready(out_bf16)
    assert out_bf16.shape == (N, A)
    assert jnp.allclose(out_bf16, ref, atol=2e-2, rtol=2e-2), "mismatch vs reference (bf16)"

    print("KERNEL_OK")
</pallas_src>

<mosaic_0001>
module attributes {stable_mosaic.version = 11 : i64} {
  func.func @vqa_kernel(%arg0: i32, %arg1: memref<2x64x32xf32, #tpu.memory_space<vmem>>, %arg2: memref<2x32xf32, #tpu.memory_space<vmem>>, %arg3: memref<32x32xf32, #tpu.memory_space<vmem>>, %arg4: memref<1x32xf32, #tpu.memory_space<vmem>>, %arg5: memref<32x64xf32, #tpu.memory_space<vmem>>, %arg6: memref<32x64xf32, #tpu.memory_space<vmem>>, %arg7: memref<1x64xf32, #tpu.memory_space<vmem>>, %arg8: memref<64x128xf32, #tpu.memory_space<vmem>>, %arg9: memref<1x128xf32, #tpu.memory_space<vmem>>, %arg10: memref<2x128xf32, #tpu.memory_space<vmem>>) attributes {dimension_semantics = [#tpu.dimension_semantics<parallel>], iteration_bounds = array<i64: 1>, scalar_prefetch = 0 : i64, scratch_operands = 0 : i64, tpu.core_type = #tpu.core_type<tc>, window_params = [{transform_indices = @transform_0, window_bounds = array<i64: 2, 64, 32>}, {transform_indices = @transform_1, window_bounds = array<i64: 2, 32>}, {pipeline_mode = #tpu.pipeline_mode<synchronous>, transform_indices = @transform_2, window_bounds = array<i64: 32, 32>}, {pipeline_mode = #tpu.pipeline_mode<synchronous>, transform_indices = @transform_3, window_bounds = array<i64: 1, 32>}, {pipeline_mode = #tpu.pipeline_mode<synchronous>, transform_indices = @transform_4, window_bounds = array<i64: 32, 64>}, {pipeline_mode = #tpu.pipeline_mode<synchronous>, transform_indices = @transform_5, window_bounds = array<i64: 32, 64>}, {pipeline_mode = #tpu.pipeline_mode<synchronous>, transform_indices = @transform_6, window_bounds = array<i64: 1, 64>}, {pipeline_mode = #tpu.pipeline_mode<synchronous>, transform_indices = @transform_7, window_bounds = array<i64: 64, 128>}, {pipeline_mode = #tpu.pipeline_mode<synchronous>, transform_indices = @transform_8, window_bounds = array<i64: 1, 128>}, {transform_indices = @transform_9, window_bounds = array<i64: 2, 128>}]} {
    %c0 = arith.constant 0 : index
    %c0_0 = arith.constant 0 : index
    %c0_1 = arith.constant 0 : index
    %0 = vector.load %arg1[%c0, %c0_0, %c0_1] : memref<2x64x32xf32, #tpu.memory_space<vmem>>, vector<2x64x32xf32>
    %1 = arith.mulf %0, %0 : vector<2x64x32xf32>
    %cst = arith.constant dense<0.000000e+00> : vector<2x64xf32>
    %2 = vector.multi_reduction <add>, %1, %cst [2] : vector<2x64x32xf32> to vector<2x64xf32>
    %3 = vector.shape_cast %2 : vector<2x64xf32> to vector<2x64x1xf32>
    %4 = math.sqrt %3 : vector<2x64x1xf32>
    %cst_2 = arith.constant 9.99999993E-9 : f32
    %5 = vector.broadcast %cst_2 : f32 to vector<2x64x1xf32>
    %6 = arith.addf %4, %5 : vector<2x64x1xf32>
    %7 = tpu.reciprocal %6 : vector<2x64x1xf32> -> vector<2x64x1xf32>
    %8 = vector.broadcast %7 : vector<2x64x1xf32> to vector<2x64x32xf32>
    %9 = arith.mulf %0, %8 : vector<2x64x32xf32>
    %cst_3 = arith.constant dense<0.000000e+00> : vector<2x32xf32>
    %10 = vector.multi_reduction <add>, %9, %cst_3 [1] : vector<2x64x32xf32> to vector<2x32xf32>
    %cst_4 = arith.constant 6.400000e+01 : f32
    %11 = vector.broadcast %cst_4 : f32 to vector<2x32xf32>
    %12 = arith.divf %10, %11 : vector<2x32xf32>
    %c0_5 = arith.constant 0 : index
    %c0_6 = arith.constant 0 : index
    %13 = vector.load %arg2[%c0_5, %c0_6] : memref<2x32xf32, #tpu.memory_space<vmem>>, vector<2x32xf32>
    %c0_7 = arith.constant 0 : index
    %c0_8 = arith.constant 0 : index
    %14 = vector.load %arg3[%c0_7, %c0_8] : memref<32x32xf32, #tpu.memory_space<vmem>>, vector<32x32xf32>
    %cst_9 = arith.constant dense<0.000000e+00> : vector<2x32xf32>
    %15 = tpu.matmul %13, %14, %cst_9 {dimension_numbers = #tpu.dot_dimension_numbers<[1], [0], [0], [1], [0, 0, 1, 1], [], []>} : vector<2x32xf32>, vector<32x32xf32>, vector<2x32xf32> -> vector<2x32xf32>
    %c0_10 = arith.constant 0 : index
    %c0_11 = arith.constant 0 : index
    %16 = vector.load %arg4[%c0_10, %c0_11] : memref<1x32xf32, #tpu.memory_space<vmem>>, vector<1x32xf32>
    %17 = vector.broadcast %16 : vector<1x32xf32> to vector<2x32xf32>
    %18 = arith.addf %15, %17 : vector<2x32xf32>
    %19 = math.tanh %18 : vector<2x32xf32>
    %c0_12 = arith.constant 0 : index
    %c0_13 = arith.constant 0 : index
    %20 = vector.load %arg5[%c0_12, %c0_13] : memref<32x64xf32, #tpu.memory_space<vmem>>, vector<32x64xf32>
    %cst_14 = arith.constant dense<0.000000e+00> : vector<2x64xf32>
    %21 = tpu.matmul %12, %20, %cst_14 {dimension_numbers = #tpu.dot_dimension_numbers<[1], [0], [0], [1], [0, 0, 1, 1], [], []>} : vector<2x32xf32>, vector<32x64xf32>, vector<2x64xf32> -> vector<2x64xf32>
    %c0_15 = arith.constant 0 : index
    %c0_16 = arith.constant 0 : index
    %22 = vector.load %arg6[%c0_15, %c0_16] : memref<32x64xf32, #tpu.memory_space<vmem>>, vector<32x64xf32>
    %cst_17 = arith.constant dense<0.000000e+00> : vector<2x64xf32>
    %23 = tpu.matmul %19, %22, %cst_17 {dimension_numbers = #tpu.dot_dimension_numbers<[1], [0], [0], [1], [0, 0, 1, 1], [], []>} : vector<2x32xf32>, vector<32x64xf32>, vector<2x64xf32> -> vector<2x64xf32>
    %24 = arith.addf %21, %23 : vector<2x64xf32>
    %c0_18 = arith.constant 0 : index
    %c0_19 = arith.constant 0 : index
    %25 = vector.load %arg7[%c0_18, %c0_19] : memref<1x64xf32, #tpu.memory_space<vmem>>, vector<1x64xf32>
    %26 = vector.broadcast %25 : vector<1x64xf32> to vector<2x64xf32>
    %27 = arith.addf %24, %26 : vector<2x64xf32>
    %cst_20 = arith.constant 0.000000e+00 : f32
    %28 = vector.broadcast %cst_20 : f32 to vector<2x64xf32>
    %29 = arith.maximumf %27, %28 : vector<2x64xf32>
    %c0_21 = arith.constant 0 : index
    %c0_22 = arith.constant 0 : index
    %30 = vector.load %arg8[%c0_21, %c0_22] : memref<64x128xf32, #tpu.memory_space<vmem>>, vector<64x128xf32>
    %cst_23 = arith.constant dense<0.000000e+00> : vector<2x128xf32>
    %31 = tpu.matmul %29, %30, %cst_23 {dimension_numbers = #tpu.dot_dimension_numbers<[1], [0], [0], [1], [0, 0, 1, 1], [], []>} : vector<2x64xf32>, vector<64x128xf32>, vector<2x128xf32> -> vector<2x128xf32>
    %c0_24 = arith.constant 0 : index
    %c0_25 = arith.constant 0 : index
    %32 = vector.load %arg9[%c0_24, %c0_25] : memref<1x128xf32, #tpu.memory_space<vmem>>, vector<1x128xf32>
    %33 = vector.broadcast %32 : vector<1x128xf32> to vector<2x128xf32>
    %34 = arith.addf %31, %33 : vector<2x128xf32>
    %c0_26 = arith.constant 0 : index
    %c0_27 = arith.constant 0 : index
    %35 = vector.load %arg10[%c0_26, %c0_27] : memref<2x128xf32, #tpu.memory_space<vmem>>, vector<2x128xf32>
    tpu.vector_store %arg10[%c0_26, %c0_27], %34 {strides = array<i32>} : memref<2x128xf32, #tpu.memory_space<vmem>>, vector<2x128xf32>,
    return
  }
  func.func @transform_0(%arg0: i32) -> (i32, i32, i32) {
    %c0_i32 = arith.constant 0 : i32
    %c0_i32_0 = arith.constant 0 : i32
    %c0_i32_1 = arith.constant 0 : i32
    return %arg0, %c0_i32, %c0_i32_0 : i32, i32, i32
  }
  func.func @transform_1(%arg0: i32) -> (i32, i32) {
    %c0_i32 = arith.constant 0 : i32
    %c0_i32_0 = arith.constant 0 : i32
    return %arg0, %c0_i32 : i32, i32
  }
  func.func @transform_2(%arg0: i32) -> (i32, i32) {
    %c0_i32 = arith.constant 0 : i32
    %c0_i32_0 = arith.constant 0 : i32
    %c0_i32_1 = arith.constant 0 : i32
    return %c0_i32, %c0_i32_0 : i32, i32
  }
  func.func @transform_3(%arg0: i32) -> (i32, i32) {
    %c0_i32 = arith.constant 0 : i32
    %c0_i32_0 = arith.constant 0 : i32
    %c0_i32_1 = arith.constant 0 : i32
    return %c0_i32, %c0_i32_0 : i32, i32
  }
  func.func @transform_4(%arg0: i32) -> (i32, i32) {
    %c0_i32 = arith.constant 0 : i32
    %c0_i32_0 = arith.constant 0 : i32
    %c0_i32_1 = arith.constant 0 : i32
    return %c0_i32, %c0_i32_0 : i32, i32
  }
  func.func @transform_5(%arg0: i32) -> (i32, i32) {
    %c0_i32 = arith.constant 0 : i32
    %c0_i32_0 = arith.constant 0 : i32
    %c0_i32_1 = arith.constant 0 : i32
    return %c0_i32, %c0_i32_0 : i32, i32
  }
  func.func @transform_6(%arg0: i32) -> (i32, i32) {
    %c0_i32 = arith.constant 0 : i32
    %c0_i32_0 = arith.constant 0 : i32
    %c0_i32_1 = arith.constant 0 : i32
    return %c0_i32, %c0_i32_0 : i32, i32
  }
  func.func @transform_7(%arg0: i32) -> (i32, i32) {
    %c0_i32 = arith.constant 0 : i32
    %c0_i32_0 = arith.constant 0 : i32
    %c0_i32_1 = arith.constant 0 : i32
    return %c0_i32, %c0_i32_0 : i32, i32
  }
  func.func @transform_8(%arg0: i32) -> (i32, i32) {
    %c0_i32 = arith.constant 0 : i32
    %c0_i32_0 = arith.constant 0 : i32
    %c0_i32_1 = arith.constant 0 : i32
    return %c0_i32, %c0_i32_0 : i32, i32
  }
  func.func @transform_9(%arg0: i32) -> (i32, i32) {
    %c0_i32 = arith.constant 0 : i32
    %c0_i32_0 = arith.constant 0 : i32
    return %arg0, %c0_i32 : i32, i32
  }
}

</mosaic_0001>

<llo_original>
// kernel: tpu_custom_call.1
$region0: #{tpu_custom_call.1}
  #allocation0 [shape = 'u32[]', space=smem, size = 0x4, offset = 0x4, fixed_abs, tag = 'smem constant byte address 0x4 - core index']
  #allocation1 [shape = 'u32[144,128]{1,0:T(1,128)}', space=vmem, size = 0x12000, scoped, tag = 'internal scratch']
  %s0 = inlined_call_operand.vmem [shape: f32[2,64,32], index: 0, kind: input, shape index: {}]
  %s1 = inlined_call_operand.vmem [shape: f32[2,32], index: 1, kind: input, shape index: {}]
  %s2 = inlined_call_operand.vmem [shape: f32[32,32], index: 2, kind: input, shape index: {}]
  %s3 = inlined_call_operand.vmem [shape: f32[1,32], index: 3, kind: input, shape index: {}]
  %s4 = inlined_call_operand.vmem [shape: f32[32,64], index: 4, kind: input, shape index: {}]
  %s5 = inlined_call_operand.vmem [shape: f32[32,64], index: 5, kind: input, shape index: {}]
  %s6 = inlined_call_operand.vmem [shape: f32[1,64], index: 6, kind: input, shape index: {}]
  %s7 = inlined_call_operand.vmem [shape: f32[64,128], index: 7, kind: input, shape index: {}]
  %s8 = inlined_call_operand.vmem [shape: f32[1,128], index: 8, kind: input, shape index: {}]
  %s9 = inlined_call_operand.hbm [shape: f32[2,128], index: 9, kind: output, shape index: {}]
  %s10 = sld [smem:[#allocation0]]
  $region46: #{tpu_custom_call.1} parent=0
    _
  %s12 = ssub.s32 1, %s10
  %s13 = scalar_select 0, %s12, %s10
  $region1: #{tpu_custom_call.1} parent=0
    #allocation2 [shape = 'u8[1024]{0}', space=vmem, size = 0x400, scoped, tag = 'output window, operand 0, single buffered']
    #allocation3 [shape = 's32[1]{0}', space=sflag, size = 0x4, scoped, tag = 'scoped memory for tpu_custom_call.1']
    %14 = vsyncpa [#allocation3], 0
    // Predicated region
    $region2: #{tpu_custom_call.1} parent=1 // pred_check
      _
    $region3: #{tpu_custom_call.1} parent=1 // pred_check_branch
      %16 = sbr.rel (0) target = $region5
    $region4: #{tpu_custom_call.1} parent=1 // pred_region
      _
    $region5: #{tpu_custom_call.1} parent=1 // pred_fallthru
      _
    // Predicated region
    $region6: #{tpu_custom_call.1} parent=1 // pred_check
      _
    $region7: #{tpu_custom_call.1} parent=1 // pred_check_branch
      %18 = sbr.rel (0) target = $region9
    $region8: #{tpu_custom_call.1} parent=1 // pred_region
      _
    $region9: #{tpu_custom_call.1} parent=1 // pred_fallthru
      _
    // Predicated region
    $region10: #{tpu_custom_call.1} parent=1 // pred_check
      _
    $region11: #{tpu_custom_call.1} parent=1 // pred_check_branch
      %20 = sbr.rel (0) target = $region13
    $region12: #{tpu_custom_call.1} parent=1 // pred_region
      _
    $region13: #{tpu_custom_call.1} parent=1 // pred_fallthru
      _
    // Predicated region
    $region14: #{tpu_custom_call.1} parent=1 // pred_check
      _
    $region15: #{tpu_custom_call.1} parent=1 // pred_check_branch
      %22 = sbr.rel (0) target = $region17
    $region16: #{tpu_custom_call.1} parent=1 // pred_region
      _
    $region17: #{tpu_custom_call.1} parent=1 // pred_fallthru
      _
    // Predicated region
    $region18: #{tpu_custom_call.1} parent=1 // pred_check
      _
    $region19: #{tpu_custom_call.1} parent=1 // pred_check_branch
      %24 = sbr.rel (0) target = $region21
    $region20: #{tpu_custom_call.1} parent=1 // pred_region
      _
    $region21: #{tpu_custom_call.1} parent=1 // pred_fallthru
      _
    // Predicated region
    $region22: #{tpu_custom_call.1} parent=1 // pred_check
      _
    $region23: #{tpu_custom_call.1} parent=1 // pred_check_branch
      %26 = sbr.rel (0) target = $region25
    $region24: #{tpu_custom_call.1} parent=1 // pred_region
      _
    $region25: #{tpu_custom_call.1} parent=1 // pred_fallthru
      _
    // Predicated region
    $region26: #{tpu_custom_call.1} parent=1 // pred_check
      _
    $region27: #{tpu_custom_call.1} parent=1 // pred_check_branch
      %28 = sbr.rel (0) target = $region29
    $region28: #{tpu_custom_call.1} parent=1 // pred_region
      _
    $region29: #{tpu_custom_call.1} parent=1 // pred_fallthru
      _
    // Predicated region
    $region30: #{tpu_custom_call.1} parent=1 // pred_check
      _
    $region31: #{tpu_custom_call.1} parent=1 // pred_check_branch
      %30 = sbr.rel (0) target = $region33
    $region32: #{tpu_custom_call.1} parent=1 // pred_region
      _
    $region33: #{tpu_custom_call.1} parent=1 // pred_fallthru
      _
    // Predicated region
    $region34: #{tpu_custom_call.1} parent=1 // pred_check
      _
    $region35: #{tpu_custom_call.1} parent=1 // pred_check_branch
      %32 = sbr.rel (0) target = $region37
    $region36: #{tpu_custom_call.1} parent=1 // pred_region
      _
    $region37: #{tpu_custom_call.1} parent=1 // pred_fallthru
      _
    %v33 = vld [vmem:[%s0] sm:$0xff]
    %v34 = vld [vmem:[%s0 + $0x8] sm:$0xff]
    %v35 = vld [vmem:[%s0 + $0x10] sm:$0xff]
    %v36 = vld [vmem:[%s0 + $0x18] sm:$0xff]
    %v37 = vld [vmem:[%s0 + $0x20] sm:$0xff]
    %v38 = vld [vmem:[%s0 + $0x28] sm:$0xff]
    %v39 = vld [vmem:[%s0 + $0x30] sm:$0xff]
    %v40 = vld [vmem:[%s0 + $0x38] sm:$0xff]
    %v41 = vld [vmem:[%s0 + $0x40] sm:$0xff]
    %v42 = vld [vmem:[%s0 + $0x48] sm:$0xff]
    %v43 = vld [vmem:[%s0 + $0x50] sm:$0xff]
    %v44 = vld [vmem:[%s0 + $0x58] sm:$0xff]
    %v45 = vld [vmem:[%s0 + $0x60] sm:$0xff]
    %v46 = vld [vmem:[%s0 + $0x68] sm:$0xff]
    %v47 = vld [vmem:[%s0 + $0x70] sm:$0xff]
    %v48 = vld [vmem:[%s0 + $0x78] sm:$0xff]
    %v49 = vmul.f32 %v33, %v33
    %v50 = vmul.f32 %v34, %v34
    %v51 = vmul.f32 %v35, %v35
    %v52 = vmul.f32 %v36, %v36
    %v53 = vmul.f32 %v37, %v37
    %v54 = vmul.f32 %v38, %v38
    %v55 = vmul.f32 %v39, %v39
    %v56 = vmul.f32 %v40, %v40
    %v57 = vmul.f32 %v41, %v41
    %v58 = vmul.f32 %v42, %v42
    %v59 = vmul.f32 %v43, %v43
    %v60 = vmul.f32 %v44, %v44
    %v61 = vmul.f32 %v45, %v45
    %v62 = vmul.f32 %v46, %v46
    %v63 = vmul.f32 %v47, %v47
    %v64 = vmul.f32 %v48, %v48
    %vm65 = vcmask 261120
    %v66 = vsel %vm65, %v49, 0.0
    %67 = vadd.xlane.f32.xlu0 %v66
    %v68 = vpop.xlane.xlu0 %67
    %v69 = vsel %vm65, %v50, 0.0
    %70 = vadd.xlane.f32.xlu0 %v69
    %v71 = vpop.xlane.xlu0 %70
    %v72 = vsel %vm65, %v51, 0.0
    %73 = vadd.xlane.f32.xlu0 %v72
    %v74 = vpop.xlane.xlu0 %73
    %v75 = vsel %vm65, %v52, 0.0
    %76 = vadd.xlane.f32.xlu0 %v75
    %v77 = vpop.xlane.xlu0 %76
    %v78 = vsel %vm65, %v53, 0.0
    %79 = vadd.xlane.f32.xlu0 %v78
    %v80 = vpop.xlane.xlu0 %79
    %v81 = vsel %vm65, %v54, 0.0
    %82 = vadd.xlane.f32.xlu0 %v81
    %v83 = vpop.xlane.xlu0 %82
    %v84 = vsel %vm65, %v55, 0.0
    %85 = vadd.xlane.f32.xlu0 %v84
    %v86 = vpop.xlane.xlu0 %85
    %v87 = vsel %vm65, %v56, 0.0
    %88 = vadd.xlane.f32.xlu0 %v87
    %v89 = vpop.xlane.xlu0 %88
    %v90 = vsel %vm65, %v57, 0.0
    %91 = vadd.xlane.f32.xlu0 %v90
    %v92 = vpop.xlane.xlu0 %91
    %v93 = vsel %vm65, %v58, 0.0
    %94 = vadd.xlane.f32.xlu0 %v93
    %v95 = vpop.xlane.xlu0 %94
    %v96 = vsel %vm65, %v59, 0.0
    %97 = vadd.xlane.f32.xlu0 %v96
    %v98 = vpop.xlane.xlu0 %97
    %v99 = vsel %vm65, %v60, 0.0
    %100 = vadd.xlane.f32.xlu0 %v99
    %v101 = vpop.xlane.xlu0 %100
    %v102 = vsel %vm65, %v61, 0.0
    %103 = vadd.xlane.f32.xlu0 %v102
    %v104 = vpop.xlane.xlu0 %103
    %v105 = vsel %vm65, %v62, 0.0
    %106 = vadd.xlane.f32.xlu0 %v105
    %v107 = vpop.xlane.xlu0 %106
    %v108 = vsel %vm65, %v63, 0.0
    %109 = vadd.xlane.f32.xlu0 %v108
    %v110 = vpop.xlane.xlu0 %109
    %v111 = vsel %vm65, %v64, 0.0
    %112 = vadd.xlane.f32.xlu0 %v111
    %v113 = vpop.xlane.xlu0 %112
    %v114 = vrsqrt.pop %v68
    %v115 = vmul.f32 %v68, %v114
    %vm116 = vcmp.eq.f32.partialorder %v68, inf
    %v117 = vsel %vm116, %v68, %v115
    %vm118 = vcmp.eq.f32.partialorder %v68, 0.0
    %v119 = vand.u32 %v68, 2147483648
    %v120 = vsel %vm118, %v119, %v117
    %v121 = vrsqrt.pop %v71
    %v122 = vmul.f32 %v71, %v121
    %vm123 = vcmp.eq.f32.partialorder %v71, inf
    %v124 = vsel %vm123, %v71, %v122
    %vm125 = vcmp.eq.f32.partialorder %v71, 0.0
    %v126 = vand.u32 %v71, 2147483648
    %v127 = vsel %vm125, %v126, %v124
    %v128 = vrsqrt.pop %v74
    %v129 = vmul.f32 %v74, %v128
    %vm130 = vcmp.eq.f32.partialorder %v74, inf
    %v131 = vsel %vm130, %v74, %v129
    %vm132 = vcmp.eq.f32.partialorder %v74, 0.0
    %v133 = vand.u32 %v74, 2147483648
    %v134 = vsel %vm132, %v133, %v131
    %v135 = vrsqrt.pop %v77
    %v136 = vmul.f32 %v77, %v135
    %vm137 = vcmp.eq.f32.partialorder %v77, inf
    %v138 = vsel %vm137, %v77, %v136
    %vm139 = vcmp.eq.f32.partialorder %v77, 0.0
    %v140 = vand.u32 %v77, 2147483648
    %v141 = vsel %vm139, %v140, %v138
    %v142 = vrsqrt.pop %v80
    %v143 = vmul.f32 %v80, %v142
    %vm144 = vcmp.eq.f32.partialorder %v80, inf
    %v145 = vsel %vm144, %v80, %v143
    %vm146 = vcmp.eq.f32.partialorder %v80, 0.0
    %v147 = vand.u32 %v80, 2147483648
    %v148 = vsel %vm146, %v147, %v145
    %v149 = vrsqrt.pop %v83
    %v150 = vmul.f32 %v83, %v149
    %vm151 = vcmp.eq.f32.partialorder %v83, inf
    %v152 = vsel %vm151, %v83, %v150
    %vm153 = vcmp.eq.f32.partialorder %v83, 0.0
    %v154 = vand.u32 %v83, 2147483648
    %v155 = vsel %vm153, %v154, %v152
    %v156 = vrsqrt.pop %v86
    %v157 = vmul.f32 %v86, %v156
    %vm158 = vcmp.eq.f32.partialorder %v86, inf
    %v159 = vsel %vm158, %v86, %v157
    %vm160 = vcmp.eq.f32.partialorder %v86, 0.0
    %v161 = vand.u32 %v86, 2147483648
    %v162 = vsel %vm160, %v161, %v159
    %v163 = vrsqrt.pop %v89
    %v164 = vmul.f32 %v89, %v163
    %vm165 = vcmp.eq.f32.partialorder %v89, inf
    %v166 = vsel %vm165, %v89, %v164
    %vm167 = vcmp.eq.f32.partialorder %v89, 0.0
    %v168 = vand.u32 %v89, 2147483648
    %v169 = vsel %vm167, %v168, %v166
    %v170 = vrsqrt.pop %v92
    %v171 = vmul.f32 %v92, %v170
    %vm172 = vcmp.eq.f32.partialorder %v92, inf
    %v173 = vsel %vm172, %v92, %v171
    %vm174 = vcmp.eq.f32.partialorder %v92, 0.0
    %v175 = vand.u32 %v92, 2147483648
    %v176 = vsel %vm174, %v175, %v173
    %v177 = vrsqrt.pop %v95
    %v178 = vmul.f32 %v95, %v177
    %vm179 = vcmp.eq.f32.partialorder %v95, inf
    %v180 = vsel %vm179, %v95, %v178
    %vm181 = vcmp.eq.f32.partialorder %v95, 0.0
    %v182 = vand.u32 %v95, 2147483648
    %v183 = vsel %vm181, %v182, %v180
    %v184 = vrsqrt.pop %v98
    %v185 = vmul.f32 %v98, %v184
    %vm186 = vcmp.eq.f32.partialorder %v98, inf
    %v187 = vsel %vm186, %v98, %v185
    %vm188 = vcmp.eq.f32.partialorder %v98, 0.0
    %v189 = vand.u32 %v98, 2147483648
    %v190 = vsel %vm188, %v189, %v187
    %v191 = vrsqrt.pop %v101
    %v192 = vmul.f32 %v101, %v191
    %vm193 = vcmp.eq.f32.partialorder %v101, inf
    %v194 = vsel %vm193, %v101, %v192
    %vm195 = vcmp.eq.f32.partialorder %v101, 0.0
    %v196 = vand.u32 %v101, 2147483648
    %v197 = vsel %vm195, %v196, %v194
    %v198 = vrsqrt.pop %v104
    %v199 = vmul.f32 %v104, %v198
    %vm200 = vcmp.eq.f32.partialorder %v104, inf
    %v201 = vsel %vm200, %v104, %v199
    %vm202 = vcmp.eq.f32.partialorder %v104, 0.0
    %v203 = vand.u32 %v104, 2147483648
    %v204 = vsel %vm202, %v203, %v201
    %v205 = vrsqrt.pop %v107
    %v206 = vmul.f32 %v107, %v205
    %vm207 = vcmp.eq.f32.partialorder %v107, inf
    %v208 = vsel %vm207, %v107, %v206
    %vm209 = vcmp.eq.f32.partialorder %v107, 0.0
    %v210 = vand.u32 %v107, 2147483648
    %v211 = vsel %vm209, %v210, %v208
    %v212 = vrsqrt.pop %v110
    %v213 = vmul.f32 %v110, %v212
    %vm214 = vcmp.eq.f32.partialorder %v110, inf
    %v215 = vsel %vm214, %v110, %v213
    %vm216 = vcmp.eq.f32.partialorder %v110, 0.0
    %v217 = vand.u32 %v110, 2147483648
    %v218 = vsel %vm216, %v217, %v215
    %v219 = vrsqrt.pop %v113
    %v220 = vmul.f32 %v113, %v219
    %vm221 = vcmp.eq.f32.partialorder %v113, inf
    %v222 = vsel %vm221, %v113, %v220
    %vm223 = vcmp.eq.f32.partialorder %v113, 0.0
    %v224 = vand.u32 %v113, 2147483648
    %v225 = vsel %vm223, %v224, %v222
    %v226 = vadd.f32 %v120, 1e-08
    %v227 = vadd.f32 %v127, 1e-08
    %v228 = vadd.f32 %v134, 1e-08
    %v229 = vadd.f32 %v141, 1e-08
    %v230 = vadd.f32 %v148, 1e-08
    %v231 = vadd.f32 %v155, 1e-08
    %v232 = vadd.f32 %v162, 1e-08
    %v233 = vadd.f32 %v169, 1e-08
    %v234 = vadd.f32 %v176, 1e-08
    %v235 = vadd.f32 %v183, 1e-08
    %v236 = vadd.f32 %v190, 1e-08
    %v237 = vadd.f32 %v197, 1e-08
    %v238 = vadd.f32 %v204, 1e-08
    %v239 = vadd.f32 %v211, 1e-08
    %v240 = vadd.f32 %v218, 1e-08
    %v241 = vadd.f32 %v225, 1e-08
    %v242 = vrcp.pop %v226
    %v243 = vrcp.pop %v227
    %v244 = vrcp.pop %v228
    %v245 = vrcp.pop %v229
    %v246 = vrcp.pop %v230
    %v247 = vrcp.pop %v231
    %v248 = vrcp.pop %v232
    %v249 = vrcp.pop %v233
    %v250 = vrcp.pop %v234
    %v251 = vrcp.pop %v235
    %v252 = vrcp.pop %v236
    %v253 = vrcp.pop %v237
    %v254 = vrcp.pop %v238
    %v255 = vrcp.pop %v239
    %v256 = vrcp.pop %v240
    %v257 = vrcp.pop %v241
    %v258 = vmul.f32 %v33, %v242
    %v259 = vmul.f32 %v34, %v243
    %v260 = vmul.f32 %v35, %v244
    %v261 = vmul.f32 %v36, %v245
    %v262 = vmul.f32 %v37, %v246
    %v263 = vmul.f32 %v38, %v247
    %v264 = vmul.f32 %v39, %v248
    %v265 = vmul.f32 %v40, %v249
    %v266 = vmul.f32 %v41, %v250
    %v267 = vmul.f32 %v42, %v251
    %v268 = vmul.f32 %v43, %v252
    %v269 = vmul.f32 %v44, %v253
    %v270 = vmul.f32 %v45, %v254
    %v271 = vmul.f32 %v46, %v255
    %v272 = vmul.f32 %v47, %v256
    %v273 = vmul.f32 %v48, %v257
    %v274 = vsel %vm65, %v258, 0.0
    %v275 = vsel %vm65, %v259, 0.0
    %v276 = vadd.f32 %v274, %v275
    %v277 = vsel %vm65, %v260, 0.0
    %v278 = vadd.f32 %v276, %v277
    %v279 = vsel %vm65, %v261, 0.0
    %v280 = vadd.f32 %v278, %v279
    %v281 = vsel %vm65, %v262, 0.0
    %v282 = vadd.f32 %v280, %v281
    %v283 = vsel %vm65, %v263, 0.0
    %v284 = vadd.f32 %v282, %v283
    %v285 = vsel %vm65, %v264, 0.0
    %v286 = vadd.f32 %v284, %v285
    %v287 = vsel %vm65, %v265, 0.0
    %v288 = vadd.f32 %v286, %v287
    %v289 = vrot.slane %v288, 4
    %v290 = vadd.f32 %v288, %v289
    %v291 = vrot.slane %v290, 2
    %v292 = vadd.f32 %v290, %v291
    %v293 = vrot.slane %v292, 1
    %v294 = vadd.f32 %v292, %v293
    %v295 = vsel %vm65, %v266, 0.0
    %v296 = vsel %vm65, %v267, 0.0
    %v297 = vadd.f32 %v295, %v296
    %v298 = vsel %vm65, %v268, 0.0
    %v299 = vadd.f32 %v297, %v298
    %v300 = vsel %vm65, %v269, 0.0
    %v301 = vadd.f32 %v299, %v300
    %v302 = vsel %vm65, %v270, 0.0
    %v303 = vadd.f32 %v301, %v302
    %v304 = vsel %vm65, %v271, 0.0
    %v305 = vadd.f32 %v303, %v304
    %v306 = vsel %vm65, %v272, 0.0
    %v307 = vadd.f32 %v305, %v306
    %v308 = vsel %vm65, %v273, 0.0
    %v309 = vadd.f32 %v307, %v308
    %v310 = vrot.slane %v309, 4
    %v311 = vadd.f32 %v309, %v310
    %v312 = vrot.slane %v311, 2
    %v313 = vadd.f32 %v311, %v312
    %v314 = vrot.slane %v313, 1
    %v315 = vadd.f32 %v313, %v314
    %v316 = vrcp.pop 64.0
    %v317 = vmul.f32 %v294, %v316
    %v318 = vmul.f32 %v315, %v316
    %v319 = vld [vmem:[%s1] sm:$0x3]
    %v320 = vld [vmem:[%s2] sm:$0xff]
    %v321 = vld [vmem:[%s2 + $0x8] sm:$0xff]
    %v322 = vld [vmem:[%s2 + $0x10] sm:$0xff]
    %v323 = vld [vmem:[%s2 + $0x18] sm:$0xff]
    %v324 = vld [vmem:[%s3] sm:$0x1]
    %v326 = vlaneseq
    %v327 = vshrl.u32 %v326, 7
    %v328 = vsub.s32 0, %v327
    %v329 = vrot.slane %v324, %v328
    %v332 = vsel %vm65, %v319, 0
    %334 = vmatprep.subr.mxu0 0.0
    %335 = vmatpush1.msra.mxu0 0.0
    %336 = vmatprep.subr.mxu0 0.0
    %337 = vmatpush1.msra.mxu0 0.0
    %338 = vmatprep.subr.mxu0 0.0
    %339 = vmatpush1.msra.mxu0 0.0
    %340 = vmatprep.subr.mxu0 0.0
    %341 = vmatpush1.msra.mxu0 0.0
    %342 = vmatprep.subr.mxu0 0.0
    %343 = vmatpush1.msra.mxu0 0.0
    %344 = vmatprep.subr.mxu0 0.0
    %345 = vmatpush1.msra.mxu0 0.0
    %346 = vmatprep.subr.mxu0 0.0
    %347 = vmatpush1.msra.mxu0 0.0
    %348 = vmatprep.subr.mxu0 0.0
    %349 = vmatpush1.msra.mxu0 0.0
    %350 = vmatprep.subr.mxu0 0.0
    %351 = vmatpush1.msra.mxu0 0.0
    %352 = vmatprep.subr.mxu0 0.0
    %353 = vmatpush1.msra.mxu0 0.0
    %354 = vmatprep.subr.mxu0 0.0
    %355 = vmatpush1.msra.mxu0 0.0
    %356 = vmatprep.subr.mxu0 0.0
    %357 = vmatpush1.msra.mxu0 0.0
    %358 = vmatprep.subr.mxu0 0.0
    %359 = vmatpush1.msra.mxu0 %v323
    %360 = vmatprep.subr.mxu0 0.0
    %361 = vmatpush1.msra.mxu0 %v322
    %362 = vmatprep.subr.mxu0 0.0
    %363 = vmatpush1.msra.mxu0 %v321
    %364 = vmatprep.subr.mxu0 0.0
    %365 = vmatpush1.msra.mxu0 %v320
    %366 = vmatprep.subr.mxu0 0.0
    %367 = vmatpush2.msra.mxu0 0.0
    %368 = vmatprep.subr.mxu0 0.0
    %369 = vmatpush2.msra.mxu0 0.0
    %370 = vmatprep.subr.mxu0 0.0
    %371 = vmatpush2.msra.mxu0 0.0
    %372 = vmatprep.subr.mxu0 0.0
    %373 = vmatpush2.msra.mxu0 0.0
    %374 = vmatprep.subr.mxu0 0.0
    %375 = vmatpush2.msra.mxu0 0.0
    %376 = vmatprep.subr.mxu0 0.0
    %377 = vmatpush2.msra.mxu0 0.0
    %378 = vmatprep.subr.mxu0 0.0
    %379 = vmatpush2.msra.mxu0 0.0
    %380 = vmatprep.subr.mxu0 0.0
    %381 = vmatpush2.msra.mxu0 0.0
    %382 = vmatprep.subr.mxu0 0.0
    %383 = vmatpush2.msra.mxu0 0.0
    %384 = vmatprep.subr.mxu0 0.0
    %385 = vmatpush2.msra.mxu0 0.0
    %386 = vmatprep.subr.mxu0 0.0
    %387 = vmatpush2.msra.mxu0 0.0
    %388 = vmatprep.subr.mxu0 0.0
    %389 = vmatpush2.msra.mxu0 0.0
    %390 = vmatprep.subr.mxu0 0.0
    %391 = vmatpush2.msra.mxu0 0.0
    %392 = vmatprep.subr.mxu0 0.0
    %393 = vmatpush2.msra.mxu0 0.0
    %394 = vmatprep.subr.mxu0 0.0
    %395 = vmatpush2.msra.mxu0 0.0
    %396 = vmatprep.subr.mxu0 0.0
    %397 = vmatpush2.msra.mxu0 0.0
    %398 = vmatprep.mubr.f32.mxu0 0.0
    %399 = vmatmul.mubr.f32.gmra.mxu0 %v332
    %v400 = vpop.f32.mrf.mxu0
    %v401 = vadd.f32 %v329, %v400
    %v402 = vpop.f32.mrf.mxu0
    %403 = vdwg.mxu0
    %v404 = vtanh.pop %v401
    %v405 = vld [vmem:[%s4] sm:$0xff]
    %v406 = vld [vmem:[%s4 + $0x8] sm:$0xff]
    %v407 = vld [vmem:[%s4 + $0x10] sm:$0xff]
    %v408 = vld [vmem:[%s4 + $0x18] sm:$0xff]
    %v409 = vld [vmem:[%s5] sm:$0xff]
    %v410 = vld [vmem:[%s5 + $0x8] sm:$0xff]
    %v411 = vld [vmem:[%s5 + $0x10] sm:$0xff]
    %v412 = vld [vmem:[%s5 + $0x18] sm:$0xff]
    %v414 = vsel %vm65, %v404, 0
    %416 = vmatprep.subr.mxu0 0.0
    %417 = vmatpush1.msra.mxu0 0.0
    %418 = vmatprep.subr.mxu0 0.0
    %419 = vmatpush1.msra.mxu0 0.0
    %420 = vmatprep.subr.mxu0 0.0
    %421 = vmatpush1.msra.mxu0 0.0
    %422 = vmatprep.subr.mxu0 0.0
    %423 = vmatpush1.msra.mxu0 0.0
    %424 = vmatprep.subr.mxu0 0.0
    %425 = vmatpush1.msra.mxu0 0.0
    %426 = vmatprep.subr.mxu0 0.0
    %427 = vmatpush1.msra.mxu0 0.0
    %428 = vmatprep.subr.mxu0 0.0
    %429 = vmatpush1.msra.mxu0 0.0
    %430 = vmatprep.subr.mxu0 0.0
    %431 = vmatpush1.msra.mxu0 0.0
    %432 = vmatprep.subr.mxu0 0.0
    %433 = vmatpush1.msra.mxu0 0.0
    %434 = vmatprep.subr.mxu0 0.0
    %435 = vmatpush1.msra.mxu0 0.0
    %436 = vmatprep.subr.mxu0 0.0
    %437 = vmatpush1.msra.mxu0 0.0
    %438 = vmatprep.subr.mxu0 0.0
    %439 = vmatpush1.msra.mxu0 0.0
    %440 = vmatprep.subr.mxu0 0.0
    %441 = vmatpush1.msra.mxu0 %v412
    %442 = vmatprep.subr.mxu0 0.0
    %443 = vmatpush1.msra.mxu0 %v411
    %444 = vmatprep.subr.mxu0 0.0
    %445 = vmatpush1.msra.mxu0 %v410
    %446 = vmatprep.subr.mxu0 0.0
    %447 = vmatpush1.msra.mxu0 %v409
    %448 = vmatprep.subr.mxu0 0.0
    %449 = vmatpush2.msra.mxu0 0.0
    %450 = vmatprep.subr.mxu0 0.0
    %451 = vmatpush2.msra.mxu0 0.0
    %452 = vmatprep.subr.mxu0 0.0
    %453 = vmatpush2.msra.mxu0 0.0
    %454 = vmatprep.subr.mxu0 0.0
    %455 = vmatpush2.msra.mxu0 0.0
    %456 = vmatprep.subr.mxu0 0.0
    %457 = vmatpush2.msra.mxu0 0.0
    %458 = vmatprep.subr.mxu0 0.0
    %459 = vmatpush2.msra.mxu0 0.0
    %460 = vmatprep.subr.mxu0 0.0
    %461 = vmatpush2.msra.mxu0 0.0
    %462 = vmatprep.subr.mxu0 0.0
    %463 = vmatpush2.msra.mxu0 0.0
    %464 = vmatprep.subr.mxu0 0.0
    %465 = vmatpush2.msra.mxu0 0.0
    %466 = vmatprep.subr.mxu0 0.0
    %467 = vmatpush2.msra.mxu0 0.0
    %468 = vmatprep.subr.mxu0 0.0
    %469 = vmatpush2.msra.mxu0 0.0
    %470 = vmatprep.subr.mxu0 0.0
    %471 = vmatpush2.msra.mxu0 0.0
    %472 = vmatprep.subr.mxu0 0.0
    %473 = vmatpush2.msra.mxu0 0.0
    %474 = vmatprep.subr.mxu0 0.0
    %475 = vmatpush2.msra.mxu0 0.0
    %476 = vmatprep.subr.mxu0 0.0
    %477 = vmatpush2.msra.mxu0 0.0
    %478 = vmatprep.subr.mxu0 0.0
    %479 = vmatpush2.msra.mxu0 0.0
    %480 = vmatprep.mubr.f32.mxu0 0.0
    %481 = vmatmul.mubr.f32.gmra.mxu0 %v414
    %v482 = vpop.f32.mrf.mxu0
    %v483 = vadd.f32 0.0, %v482
    %v484 = vpop.f32.mrf.mxu0
    %485 = vdwg.mxu0
    %vm488 = vcmask 1041409
    %v489 = vsel %vm488, %v318, %v317
    %v490 = vsel %vm65, %v489, 0
    %492 = vmatprep.subr.mxu0 0.0
    %493 = vmatpush1.msra.mxu0 0.0
    %494 = vmatprep.subr.mxu0 0.0
    %495 = vmatpush1.msra.mxu0 0.0
    %496 = vmatprep.subr.mxu0 0.0
    %497 = vmatpush1.msra.mxu0 0.0
    %498 = vmatprep.subr.mxu0 0.0
    %499 = vmatpush1.msra.mxu0 0.0
    %500 = vmatprep.subr.mxu0 0.0
    %501 = vmatpush1.msra.mxu0 0.0
    %502 = vmatprep.subr.mxu0 0.0
    %503 = vmatpush1.msra.mxu0 0.0
    %504 = vmatprep.subr.mxu0 0.0
    %505 = vmatpush1.msra.mxu0 0.0
    %506 = vmatprep.subr.mxu0 0.0
    %507 = vmatpush1.msra.mxu0 0.0
    %508 = vmatprep.subr.mxu0 0.0
    %509 = vmatpush1.msra.mxu0 0.0
    %510 = vmatprep.subr.mxu0 0.0
    %511 = vmatpush1.msra.mxu0 0.0
    %512 = vmatprep.subr.mxu0 0.0
    %513 = vmatpush1.msra.mxu0 0.0
    %514 = vmatprep.subr.mxu0 0.0
    %515 = vmatpush1.msra.mxu0 0.0
    %516 = vmatprep.subr.mxu0 0.0
    %517 = vmatpush1.msra.mxu0 %v408
    %518 = vmatprep.subr.mxu0 0.0
    %519 = vmatpush1.msra.mxu0 %v407
    %520 = vmatprep.subr.mxu0 0.0
    %521 = vmatpush1.msra.mxu0 %v406
    %522 = vmatprep.subr.mxu0 0.0
    %523 = vmatpush1.msra.mxu0 %v405
    %524 = vmatprep.subr.mxu0 0.0
    %525 = vmatpush2.msra.mxu0 0.0
    %526 = vmatprep.subr.mxu0 0.0
    %527 = vmatpush2.msra.mxu0 0.0
    %528 = vmatprep.subr.mxu0 0.0
    %529 = vmatpush2.msra.mxu0 0.0
    %530 = vmatprep.subr.mxu0 0.0
    %531 = vmatpush2.msra.mxu0 0.0
    %532 = vmatprep.subr.mxu0 0.0
    %533 = vmatpush2.msra.mxu0 0.0
    %534 = vmatprep.subr.mxu0 0.0
    %535 = vmatpush2.msra.mxu0 0.0
    %536 = vmatprep.subr.mxu0 0.0
    %537 = vmatpush2.msra.mxu0 0.0
    %538 = vmatprep.subr.mxu0 0.0
    %539 = vmatpush2.msra.mxu0 0.0
    %540 = vmatprep.subr.mxu0 0.0
    %541 = vmatpush2.msra.mxu0 0.0
    %542 = vmatprep.subr.mxu0 0.0
    %543 = vmatpush2.msra.mxu0 0.0
    %544 = vmatprep.subr.mxu0 0.0
    %545 = vmatpush2.msra.mxu0 0.0
    %546 = vmatprep.subr.mxu0 0.0
    %547 = vmatpush2.msra.mxu0 0.0
    %548 = vmatprep.subr.mxu0 0.0
    %549 = vmatpush2.msra.mxu0 0.0
    %550 = vmatprep.subr.mxu0 0.0
    %551 = vmatpush2.msra.mxu0 0.0
    %552 = vmatprep.subr.mxu0 0.0
    %553 = vmatpush2.msra.mxu0 0.0
    %554 = vmatprep.subr.mxu0 0.0
    %555 = vmatpush2.msra.mxu0 0.0
    %556 = vmatprep.mubr.f32.mxu0 0.0
    %557 = vmatmul.mubr.f32.gmra.mxu0 %v490
    %v558 = vpop.f32.mrf.mxu0
    %v559 = vadd.f32 %v483, %v558
    %v560 = vpop.f32.mrf.mxu0
    %561 = vdwg.mxu0
    %v562 = vld [vmem:[%s6] sm:$0x1]
    %v564 = vlaneseq
    %v565 = vshrl.u32 %v564, 7
    %v566 = vsub.s32 0, %v565
    %v567 = vrot.slane %v562, %v566
    %v569 = vadd.f32 %v559, %v567
    %v570 = vmax.f32 %v569, 0.0
    %v571 = vld [vmem:[%s7] sm:$0xff]
    %v572 = vld [vmem:[%s7 + $0x8] sm:$0xff]
    %v573 = vld [vmem:[%s7 + $0x10] sm:$0xff]
    %v574 = vld [vmem:[%s7 + $0x18] sm:$0xff]
    %v575 = vld [vmem:[%s7 + $0x20] sm:$0xff]
    %v576 = vld [vmem:[%s7 + $0x28] sm:$0xff]
    %v577 = vld [vmem:[%s7 + $0x30] sm:$0xff]
    %v578 = vld [vmem:[%s7 + $0x38] sm:$0xff]
    %v579 = vld [vmem:[%s8] sm:$0x1]
    %v581 = vlaneseq
    %v582 = vshrl.u32 %v581, 7
    %v583 = vsub.s32 0, %v582
    %v584 = vrot.slane %v579, %v583
    %vm586 = vcmask 523264
    %v588 = vsel %vm586, %v570, 0
    %590 = vmatprep.subr.mxu0 0.0
    %591 = vmatpush1.msra.mxu0 0.0
    %592 = vmatprep.subr.mxu0 0.0
    %593 = vmatpush1.msra.mxu0 0.0
    %594 = vmatprep.subr.mxu0 0.0
    %595 = vmatpush1.msra.mxu0 0.0
    %596 = vmatprep.subr.mxu0 0.0
    %597 = vmatpush1.msra.mxu0 0.0
    %598 = vmatprep.subr.mxu0 0.0
    %599 = vmatpush1.msra.mxu0 0.0
    %600 = vmatprep.subr.mxu0 0.0
    %601 = vmatpush1.msra.mxu0 0.0
    %602 = vmatprep.subr.mxu0 0.0
    %603 = vmatpush1.msra.mxu0 0.0
    %604 = vmatprep.subr.mxu0 0.0
    %605 = vmatpush1.msra.mxu0 0.0
    %606 = vmatprep.subr.mxu0 0.0
    %607 = vmatpush1.msra.mxu0 %v578
    %608 = vmatprep.subr.mxu0 0.0
    %609 = vmatpush1.msra.mxu0 %v577
    %610 = vmatprep.subr.mxu0 0.0
    %611 = vmatpush1.msra.mxu0 %v576
    %612 = vmatprep.subr.mxu0 0.0
    %613 = vmatpush1.msra.mxu0 %v575
    %614 = vmatprep.subr.mxu0 0.0
    %615 = vmatpush1.msra.mxu0 %v574
    %616 = vmatprep.subr.mxu0 0.0
    %617 = vmatpush1.msra.mxu0 %v573
    %618 = vmatprep.subr.mxu0 0.0
    %619 = vmatpush1.msra.mxu0 %v572
    %620 = vmatprep.subr.mxu0 0.0
    %621 = vmatpush1.msra.mxu0 %v571
    %622 = vmatprep.subr.mxu0 0.0
    %623 = vmatpush2.msra.mxu0 0.0
    %624 = vmatprep.subr.mxu0 0.0
    %625 = vmatpush2.msra.mxu0 0.0
    %626 = vmatprep.subr.mxu0 0.0
    %627 = vmatpush2.msra.mxu0 0.0
    %628 = vmatprep.subr.mxu0 0.0
    %629 = vmatpush2.msra.mxu0 0.0
    %630 = vmatprep.subr.mxu0 0.0
    %631 = vmatpush2.msra.mxu0 0.0
    %632 = vmatprep.subr.mxu0 0.0
    %633 = vmatpush2.msra.mxu0 0.0
    %634 = vmatprep.subr.mxu0 0.0
    %635 = vmatpush2.msra.mxu0 0.0
    %636 = vmatprep.subr.mxu0 0.0
    %637 = vmatpush2.msra.mxu0 0.0
    %638 = vmatprep.subr.mxu0 0.0
    %639 = vmatpush2.msra.mxu0 0.0
    %640 = vmatprep.subr.mxu0 0.0
    %641 = vmatpush2.msra.mxu0 0.0
    %642 = vmatprep.subr.mxu0 0.0
    %643 = vmatpush2.msra.mxu0 0.0
    %644 = vmatprep.subr.mxu0 0.0
    %645 = vmatpush2.msra.mxu0 0.0
    %646 = vmatprep.subr.mxu0 0.0
    %647 = vmatpush2.msra.mxu0 0.0
    %648 = vmatprep.subr.mxu0 0.0
    %649 = vmatpush2.msra.mxu0 0.0
    %650 = vmatprep.subr.mxu0 0.0
    %651 = vmatpush2.msra.mxu0 0.0
    %652 = vmatprep.subr.mxu0 0.0
    %653 = vmatpush2.msra.mxu0 0.0
    %654 = vmatprep.mubr.f32.mxu0 0.0
    %655 = vmatmul.mubr.f32.gmra.mxu0 %v588
    %v656 = vpop.f32.mrf.mxu0
    %v657 = vadd.f32 %v584, %v656
    %v658 = vpop.f32.mrf.mxu0
    %659 = vdwg.mxu0
    %660 = vst [vmem:[#allocation2] sm:$0x3] %v657
    // Predicated region
    $region38: #{tpu_custom_call.1} parent=1 // pred_check
      _
    $region39: #{tpu_custom_call.1} parent=1 // pred_check_branch
      %662 = sbr.rel (0) target = $region41
    $region40: #{tpu_custom_call.1} parent=1 // pred_region
      %s664 = ssub.s32 32, 32
      %665 = vsyncadd [#allocation3], %s664
      %s667 = sshll.u32 [#allocation2], 4
      %s668 = int_to_ptr.vmem [resolvable:$true] %s667
      %670 = dma.vmem_to_hbm [thread:$0]  %s668, 32, %s9, [#allocation3]
    $region41: #{tpu_custom_call.1} parent=1 // pred_fallthru
      _
    // Predicated region
    $region42: #{tpu_custom_call.1} parent=1 // pred_check
      _
    $region43: #{tpu_custom_call.1} parent=1 // pred_check_branch
      %672 = sbr.rel (0) target = $region45
    $region44: #{tpu_custom_call.1} parent=1 // pred_region
      %673 = dma.done [#allocation3], 32
    $region45: #{tpu_custom_call.1} parent=1 // pred_fallthru
      _
    %674 = vsyncpa [#allocation3], 1

</llo_original>
